<compile_context>
chip_gen: v7x
topology: tpu7x:2x2x1
jax: 0.10.0
libtpu: 0.0.40
codegen_flags: <defaults>
</compile_context>

<pallas_src>
import math

import numpy as np
import jax
import jax.numpy as jnp
from jax.experimental import pallas as pl
from jax.experimental.pallas import tpu as pltpu


def byte_embedding_kernel(m_ref, w_ref, o_ref):
    # m_ref: [B*G, V]  f32  (mean-grouping x one-hot rows; padded groups are zero rows)
    # w_ref: [V, De]   f32  fused table = sqrt(Db) * W_emb @ W_out
    # o_ref: [B*G, De] f32
    o_ref[...] = jnp.dot(m_ref[...], w_ref[...], preferred_element_type=jnp.float32)


def byte_embedding_forward(m_flat, w_fused):
    BG, V = m_flat.shape
    De = w_fused.shape[1]
    return pl.pallas_call(
        byte_embedding_kernel,
        out_shape=jax.ShapeDtypeStruct((BG, De), jnp.float32),
        grid_spec=pltpu.PrefetchScalarGridSpec(
            num_scalar_prefetch=0,
            grid=(1,),  # single fat step: batch folded into the matmul M dimension
            in_specs=[
                pl.BlockSpec((BG, V), lambda i: (0, 0)),   # grouped one-hot (full block)
                pl.BlockSpec((V, De), lambda i: (0, 0)),   # fused embedding table (resident)
            ],
            out_specs=pl.BlockSpec((BG, De), lambda i: (0, 0)),
        ),
        compiler_params=pltpu.CompilerParams(dimension_semantics=("arbitrary",)),
    )(m_flat, w_fused)


def build_group_onehot_matrix(byte_groups, x_ids, vocab):
    """M[b] = mean-grouping-matrix[b] @ onehot(x[b])^T, shape [B, G_max, V].

    M[b, g, x[b, s]] += 1/|group g| for every byte position s in group g.
    Padded group rows stay zero (matching the torch Grouping padding behavior).
    """
    B, _ = x_ids.shape
    g_max = max(len(g) for g in byte_groups)
    M = np.zeros((B, g_max, vocab), dtype=np.float32)
    for b, groups in enumerate(byte_groups):
        pos = 0
        for gi, size in enumerate(groups):
            w = 1.0 / float(size)
            for s in range(pos, pos + size):
                M[b, gi, int(x_ids[b, s])] += w
            pos += size
    return jnp.asarray(M)


def build_grouping_matrix(byte_groups, num_bytes):
    """Mean-aggregation grouping matrix [B, G_max, S] (used only for the pure-JAX reference)."""
    B = len(byte_groups)
    g_max = max(len(g) for g in byte_groups)
    G = np.zeros((B, g_max, num_bytes), dtype=np.float32)
    for b, groups in enumerate(byte_groups):
        pos = 0
        for gi, size in enumerate(groups):
            G[b, gi, pos:pos + size] = 1.0 / float(size)
            pos += size
    return jnp.asarray(G)


def sinusoidal_pos_table(max_length, dim):
    position = np.arange(max_length, dtype=np.float32)[:, None]
    div_term = np.exp(np.arange(0, dim, 2, dtype=np.float32) * -(math.log(10000.0) / dim))
    pe = np.zeros((max_length, dim), dtype=np.float32)
    pe[:, 0::2] = np.sin(position * div_term)
    pe[:, 1::2] = np.cos(position * div_term)
    return jnp.asarray(pe)


if __name__ == "__main__":
    # Config (mirrors ByteEmbedding.__init__):
    #   num_embeddings=260 (256 bytes + 4 specials), embedding_dim=64,
    #   byte_embedding_dim=embedding_dim//8=8, pad_token_id=256,
    #   groups='bytes', aggregation='mean', dropout=0.0 (eval),
    #   positional_embeddings='sinusoidal', max_length=32.
    B, S = 2, 16
    V, De = 260, 64
    Db = De // 8
    pad_token_id = 256
    max_length = 32

    key = jax.random.PRNGKey(0)
    k_emb, k_out, k_x = jax.random.split(key, 3)

    # TokenEmbedding init: N(0, Db^-0.5), padding row zeroed.
    w_emb = jax.random.normal(k_emb, (V, Db), dtype=jnp.float32) * (Db ** -0.5)
    w_emb = w_emb.at[pad_token_id].set(0.0)
    # out_proj (Linear, bias=False); deterministic synthetic init, stored as [Db, De].
    w_out = jax.random.normal(k_out, (Db, De), dtype=jnp.float32) * 0.1

    # Weight prep (done once): fold the sqrt(Db) scale and out_proj into the table.
    # Padding row stays exactly zero because its W_emb row is zero.
    w_fused = (Db ** 0.5) * jnp.dot(w_emb, w_out)        # [V, De]

    # Byte sequences + grouping info (lengths/byte_groups are python-side metadata, as in torch).
    lengths = [12, 11]
    byte_groups = [[3, 2, 4, 1, 2], [4, 4, 3]]
    x_np = np.array(jax.random.randint(k_x, (B, S), 0, 256), dtype=np.int32)
    for b, L in enumerate(lengths):
        x_np[b, L:] = pad_token_id

    new_lengths = [len(g) for g in byte_groups]
    g_max = max(new_lengths)

    # Data prep: mean-grouping x one-hot, flattened over the batch -> [B*G, V].
    m_mat = build_group_onehot_matrix(byte_groups, x_np, V)         # [B, G, V]
    m_flat = m_mat.reshape(B * g_max, V)

    # --- Pallas kernel: single lane-dense MXU matmul (embedding lookup + mean grouping + out_proj) ---
    emb_flat = byte_embedding_forward(m_flat, w_fused)              # [B*G, De]
    emb_flat = jax.block_until_ready(emb_flat)
    emb = emb_flat.reshape(B, g_max, De)

    # Positional embedding (sinusoidal table lookup; pos_drop identity in eval) — returned
    # separately by the module, so kept as plain-JAX glue (constant buffer broadcast).
    pe = sinusoidal_pos_table(max_length, De)
    pos_emb = jnp.broadcast_to(pe[:g_max][None], (B, g_max, De))
    pos_emb = jax.block_until_ready(pos_emb)

    # --- pure-JAX reference (original un-fused formulation) for correctness ---
    x_ids = jnp.asarray(x_np)                                        # [B, S]
    g_mat = build_grouping_matrix(byte_groups, S)                    # [B, G, S]
    byte_emb_ref = w_emb[x_ids] * (Db ** 0.5)                        # [B, S, Db]
    grouped_ref = jnp.einsum("bgs,bsd->bgd", g_mat, byte_emb_ref)    # [B, G, Db]
    emb_ref = jnp.einsum("bgd,de->bge", grouped_ref, w_out)          # [B, G, De]
    np.testing.assert_allclose(np.asarray(emb), np.asarray(emb_ref), rtol=1e-4, atol=1e-5)

    assert emb.shape == (B, g_max, De) and pos_emb.shape == (B, g_max, De)
    assert new_lengths == [5, 3]
    print("KERNEL_OK")
</pallas_src>

<mosaic_0001>
module attributes {stable_mosaic.version = 11 : i64} {
  func.func @byte_embedding_kernel(%arg0: i32, %arg1: memref<10x260xf32, #tpu.memory_space<vmem>>, %arg2: memref<260x64xf32, #tpu.memory_space<vmem>>, %arg3: memref<10x64xf32, #tpu.memory_space<vmem>>) attributes {dimension_semantics = [#tpu.dimension_semantics<arbitrary>], iteration_bounds = array<i64: 1>, scalar_prefetch = 0 : i64, scratch_operands = 0 : i64, tpu.core_type = #tpu.core_type<tc>, window_params = [{pipeline_mode = #tpu.pipeline_mode<synchronous>, transform_indices = @transform_0, window_bounds = array<i64: 10, 260>}, {pipeline_mode = #tpu.pipeline_mode<synchronous>, transform_indices = @transform_1, window_bounds = array<i64: 260, 64>}, {pipeline_mode = #tpu.pipeline_mode<synchronous>, transform_indices = @transform_2, window_bounds = array<i64: 10, 64>}]} {
    %c0 = arith.constant 0 : index
    %c0_0 = arith.constant 0 : index
    %0 = vector.load %arg1[%c0, %c0_0] : memref<10x260xf32, #tpu.memory_space<vmem>>, vector<10x260xf32>
    %c0_1 = arith.constant 0 : index
    %c0_2 = arith.constant 0 : index
    %1 = vector.load %arg2[%c0_1, %c0_2] : memref<260x64xf32, #tpu.memory_space<vmem>>, vector<260x64xf32>
    %cst = arith.constant dense<0.000000e+00> : vector<10x64xf32>
    %2 = tpu.matmul %0, %1, %cst {dimension_numbers = #tpu.dot_dimension_numbers<[1], [0], [0], [1], [0, 0, 1, 1], [], []>} : vector<10x260xf32>, vector<260x64xf32>, vector<10x64xf32> -> vector<10x64xf32>
    %c0_3 = arith.constant 0 : index
    %c0_4 = arith.constant 0 : index
    %3 = vector.load %arg3[%c0_3, %c0_4] : memref<10x64xf32, #tpu.memory_space<vmem>>, vector<10x64xf32>
    tpu.vector_store %arg3[%c0_3, %c0_4], %2 {strides = array<i32>} : memref<10x64xf32, #tpu.memory_space<vmem>>, vector<10x64xf32>,
    return
  }
  func.func @transform_0(%arg0: i32) -> (i32, i32) {
    %c0_i32 = arith.constant 0 : i32
    %c0_i32_0 = arith.constant 0 : i32
    %c0_i32_1 = arith.constant 0 : i32
    return %c0_i32, %c0_i32_0 : i32, i32
  }
  func.func @transform_1(%arg0: i32) -> (i32, i32) {
    %c0_i32 = arith.constant 0 : i32
    %c0_i32_0 = arith.constant 0 : i32
    %c0_i32_1 = arith.constant 0 : i32
    return %c0_i32, %c0_i32_0 : i32, i32
  }
  func.func @transform_2(%arg0: i32) -> (i32, i32) {
    %c0_i32 = arith.constant 0 : i32
    %c0_i32_0 = arith.constant 0 : i32
    %c0_i32_1 = arith.constant 0 : i32
    return %c0_i32, %c0_i32_0 : i32, i32
  }
}

</mosaic_0001>

<llo_original>
// kernel: tpu_custom_call.1
$region0: #{tpu_custom_call.1}
  #allocation0 [shape = 'u32[]', space=smem, size = 0x4, offset = 0x4, fixed_abs, tag = 'smem constant byte address 0x4 - core index']
  #allocation1 [shape = 'u32[144,128]{1,0:T(1,128)}', space=vmem, size = 0x12000, scoped, tag = 'internal scratch']
  %s0 = inlined_call_operand.vmem [shape: f32[10,260], index: 0, kind: input, shape index: {}]
  %s1 = inlined_call_operand.vmem [shape: f32[260,64], index: 1, kind: input, shape index: {}]
  %s2 = inlined_call_operand.hbm [shape: f32[10,64], index: 2, kind: output, shape index: {}]
  %s3 = sld [smem:[#allocation0]]
  $region18: #{tpu_custom_call.1} parent=0
    _
  %s5 = ssub.s32 1, %s3
  %s6 = scalar_select 0, %s5, %s3
  $region1: #{tpu_custom_call.1} parent=0
    #allocation2 [shape = 'u8[8192]{0}', space=vmem, size = 0x2000, scoped, tag = 'output window, operand 0, single buffered']
    #allocation3 [shape = 's32[1]{0}', space=sflag, size = 0x4, scoped, tag = 'scoped memory for tpu_custom_call.1']
    %7 = vsyncpa [#allocation3], 0
    // Predicated region
    $region2: #{tpu_custom_call.1} parent=1 // pred_check
      _
    $region3: #{tpu_custom_call.1} parent=1 // pred_check_branch
      %9 = sbr.rel (0) target = $region5
    $region4: #{tpu_custom_call.1} parent=1 // pred_region
      _
    $region5: #{tpu_custom_call.1} parent=1 // pred_fallthru
      _
    // Predicated region
    $region6: #{tpu_custom_call.1} parent=1 // pred_check
      _
    $region7: #{tpu_custom_call.1} parent=1 // pred_check_branch
      %11 = sbr.rel (0) target = $region9
    $region8: #{tpu_custom_call.1} parent=1 // pred_region
      _
    $region9: #{tpu_custom_call.1} parent=1 // pred_fallthru
      _
    %v12 = vld [vmem:[%s0] sm:$0xff]
    %v13 = vld [vmem:[%s0 + $0x8] sm:$0xff]
    %v14 = vld [vmem:[%s0 + $0x10] sm:$0xff]
    %v15 = vld [vmem:[%s0 + $0x18] sm:$0x3]
    %v16 = vld [vmem:[%s0 + $0x20] sm:$0x3]
    %v17 = vld [vmem:[%s0 + $0x28] sm:$0x3]
    %v18 = vld [vmem:[%s1] sm:$0xff]
    %v19 = vld [vmem:[%s1 + $0x8] sm:$0xff]
    %v20 = vld [vmem:[%s1 + $0x10] sm:$0xff]
    %v21 = vld [vmem:[%s1 + $0x18] sm:$0xff]
    %v22 = vld [vmem:[%s1 + $0x20] sm:$0xff]
    %v23 = vld [vmem:[%s1 + $0x28] sm:$0xff]
    %v24 = vld [vmem:[%s1 + $0x30] sm:$0xff]
    %v25 = vld [vmem:[%s1 + $0x38] sm:$0xff]
    %v26 = vld [vmem:[%s1 + $0x40] sm:$0xff]
    %v27 = vld [vmem:[%s1 + $0x48] sm:$0xff]
    %v28 = vld [vmem:[%s1 + $0x50] sm:$0xff]
    %v29 = vld [vmem:[%s1 + $0x58] sm:$0xff]
    %v30 = vld [vmem:[%s1 + $0x60] sm:$0xff]
    %v31 = vld [vmem:[%s1 + $0x68] sm:$0xff]
    %v32 = vld [vmem:[%s1 + $0x70] sm:$0xff]
    %v33 = vld [vmem:[%s1 + $0x78] sm:$0xff]
    %v34 = vld [vmem:[%s1 + $0x80] sm:$0xff]
    %v35 = vld [vmem:[%s1 + $0x88] sm:$0xff]
    %v36 = vld [vmem:[%s1 + $0x90] sm:$0xff]
    %v37 = vld [vmem:[%s1 + $0x98] sm:$0xff]
    %v38 = vld [vmem:[%s1 + $0xa0] sm:$0xff]
    %v39 = vld [vmem:[%s1 + $0xa8] sm:$0xff]
    %v40 = vld [vmem:[%s1 + $0xb0] sm:$0xff]
    %v41 = vld [vmem:[%s1 + $0xb8] sm:$0xff]
    %v42 = vld [vmem:[%s1 + $0xc0] sm:$0xff]
    %v43 = vld [vmem:[%s1 + $0xc8] sm:$0xff]
    %v44 = vld [vmem:[%s1 + $0xd0] sm:$0xff]
    %v45 = vld [vmem:[%s1 + $0xd8] sm:$0xff]
    %v46 = vld [vmem:[%s1 + $0xe0] sm:$0xff]
    %v47 = vld [vmem:[%s1 + $0xe8] sm:$0xff]
    %v48 = vld [vmem:[%s1 + $0xf0] sm:$0xff]
    %v49 = vld [vmem:[%s1 + $0xf8] sm:$0xff]
    %v50 = vld [vmem:[%s1 + $0x100] sm:$0xf]
    %vm51 = vcmask 31744
    %v53 = vsel %vm51, %v14, 0
    %v56 = vsel %vm51, %v17, 0
    %vm58 = vcmask 1043456
    %v60 = vsel %vm58, %v50, 0
    %62 = vmatprep.subr.mxu0 0.0
    %63 = vmatpush1.msra.mxu0 %v18
    %64 = vmatprep.subr.mxu0 0.0
    %65 = vmatpush1.msra.mxu0 %v19
    %66 = vmatprep.subr.mxu0 0.0
    %67 = vmatpush1.msra.mxu0 %v20
    %68 = vmatprep.subr.mxu0 0.0
    %69 = vmatpush1.msra.mxu0 %v21
    %70 = vmatprep.subr.mxu0 0.0
    %71 = vmatpush1.msra.mxu0 %v22
    %72 = vmatprep.subr.mxu0 0.0
    %73 = vmatpush1.msra.mxu0 %v23
    %74 = vmatprep.subr.mxu0 0.0
    %75 = vmatpush1.msra.mxu0 %v24
    %76 = vmatprep.subr.mxu0 0.0
    %77 = vmatpush1.msra.mxu0 %v25
    %78 = vmatprep.subr.mxu0 0.0
    %79 = vmatpush1.msra.mxu0 %v26
    %80 = vmatprep.subr.mxu0 0.0
    %81 = vmatpush1.msra.mxu0 %v27
    %82 = vmatprep.subr.mxu0 0.0
    %83 = vmatpush1.msra.mxu0 %v28
    %84 = vmatprep.subr.mxu0 0.0
    %85 = vmatpush1.msra.mxu0 %v29
    %86 = vmatprep.subr.mxu0 0.0
    %87 = vmatpush1.msra.mxu0 %v30
    %88 = vmatprep.subr.mxu0 0.0
    %89 = vmatpush1.msra.mxu0 %v31
    %90 = vmatprep.subr.mxu0 0.0
    %91 = vmatpush1.msra.mxu0 %v32
    %92 = vmatprep.subr.mxu0 0.0
    %93 = vmatpush1.msra.mxu0 %v33
    %94 = vmatprep.subr.mxu0 0.0
    %95 = vmatpush1.msra.mxu0 %v34
    %96 = vmatprep.subr.mxu0 0.0
    %97 = vmatpush1.msra.mxu0 %v35
    %98 = vmatprep.subr.mxu0 0.0
    %99 = vmatpush1.msra.mxu0 %v36
    %100 = vmatprep.subr.mxu0 0.0
    %101 = vmatpush1.msra.mxu0 %v37
    %102 = vmatprep.subr.mxu0 0.0
    %103 = vmatpush1.msra.mxu0 %v38
    %104 = vmatprep.subr.mxu0 0.0
    %105 = vmatpush1.msra.mxu0 %v39
    %106 = vmatprep.subr.mxu0 0.0
    %107 = vmatpush1.msra.mxu0 %v40
    %108 = vmatprep.subr.mxu0 0.0
    %109 = vmatpush1.msra.mxu0 %v41
    %110 = vmatprep.subr.mxu0 0.0
    %111 = vmatpush1.msra.mxu0 %v42
    %112 = vmatprep.subr.mxu0 0.0
    %113 = vmatpush1.msra.mxu0 %v43
    %114 = vmatprep.subr.mxu0 0.0
    %115 = vmatpush1.msra.mxu0 %v44
    %116 = vmatprep.subr.mxu0 0.0
    %117 = vmatpush1.msra.mxu0 %v45
    %118 = vmatprep.subr.mxu0 0.0
    %119 = vmatpush1.msra.mxu0 %v46
    %120 = vmatprep.subr.mxu0 0.0
    %121 = vmatpush1.msra.mxu0 %v47
    %122 = vmatprep.subr.mxu0 0.0
    %123 = vmatpush1.msra.mxu0 %v48
    %124 = vmatprep.subr.mxu0 0.0
    %125 = vmatpush1.msra.mxu0 %v49
    %126 = vmatprep.mubr.f32.mxu0 %v13
    %127 = vmatmul.mubr.f32.gmra.mrb[0].mxu0 %v12
    %v128 = vpop.f32.mrb[0].mxu0
    %v129 = vadd.f32 0.0, %v128
    %v130 = vpop.f32.mrb[0].mxu0
    %131 = vmatprep.mubr.f32.mxu0 %v16
    %132 = vmatmul.mubr.f32.gmra.mrb[0].mxu0 %v15
    %v133 = vpop.f32.mrb[0].mxu0
    %v134 = vadd.f32 0.0, %v133
    %v135 = vpop.f32.mrb[0].mxu0
    %136 = vdwg.mxu0
    %137 = vmatprep.subr.mxu0 0.0
    %138 = vmatpush1.msra.mxu0 %v60
    %139 = vmatprep.subr.mxu0 0.0
    %140 = vmatpush1.msra.mxu0 0.0
    %141 = vmatprep.subr.mxu0 0.0
    %142 = vmatpush1.msra.mxu0 0.0
    %143 = vmatprep.subr.mxu0 0.0
    %144 = vmatpush1.msra.mxu0 0.0
    %145 = vmatprep.subr.mxu0 0.0
    %146 = vmatpush1.msra.mxu0 0.0
    %147 = vmatprep.subr.mxu0 0.0
    %148 = vmatpush1.msra.mxu0 0.0
    %149 = vmatprep.subr.mxu0 0.0
    %150 = vmatpush1.msra.mxu0 0.0
    %151 = vmatprep.subr.mxu0 0.0
    %152 = vmatpush1.msra.mxu0 0.0
    %153 = vmatprep.subr.mxu0 0.0
    %154 = vmatpush1.msra.mxu0 0.0
    %155 = vmatprep.subr.mxu0 0.0
    %156 = vmatpush1.msra.mxu0 0.0
    %157 = vmatprep.subr.mxu0 0.0
    %158 = vmatpush1.msra.mxu0 0.0
    %159 = vmatprep.subr.mxu0 0.0
    %160 = vmatpush1.msra.mxu0 0.0
    %161 = vmatprep.subr.mxu0 0.0
    %162 = vmatpush1.msra.mxu0 0.0
    %163 = vmatprep.subr.mxu0 0.0
    %164 = vmatpush1.msra.mxu0 0.0
    %165 = vmatprep.subr.mxu0 0.0
    %166 = vmatpush1.msra.mxu0 0.0
    %167 = vmatprep.subr.mxu0 0.0
    %168 = vmatpush1.msra.mxu0 0.0
    %169 = vmatprep.subr.mxu0 0.0
    %170 = vmatpush1.msra.mxu0 0.0
    %171 = vmatprep.subr.mxu0 0.0
    %172 = vmatpush1.msra.mxu0 0.0
    %173 = vmatprep.subr.mxu0 0.0
    %174 = vmatpush1.msra.mxu0 0.0
    %175 = vmatprep.subr.mxu0 0.0
    %176 = vmatpush1.msra.mxu0 0.0
    %177 = vmatprep.subr.mxu0 0.0
    %178 = vmatpush1.msra.mxu0 0.0
    %179 = vmatprep.subr.mxu0 0.0
    %180 = vmatpush1.msra.mxu0 0.0
    %181 = vmatprep.subr.mxu0 0.0
    %182 = vmatpush1.msra.mxu0 0.0
    %183 = vmatprep.subr.mxu0 0.0
    %184 = vmatpush1.msra.mxu0 0.0
    %185 = vmatprep.subr.mxu0 0.0
    %186 = vmatpush1.msra.mxu0 0.0
    %187 = vmatprep.subr.mxu0 0.0
    %188 = vmatpush1.msra.mxu0 0.0
    %189 = vmatprep.subr.mxu0 0.0
    %190 = vmatpush1.msra.mxu0 0.0
    %191 = vmatprep.subr.mxu0 0.0
    %192 = vmatpush1.msra.mxu0 0.0
    %193 = vmatprep.subr.mxu0 0.0
    %194 = vmatpush1.msra.mxu0 0.0
    %195 = vmatprep.subr.mxu0 0.0
    %196 = vmatpush1.msra.mxu0 0.0
    %197 = vmatprep.subr.mxu0 0.0
    %198 = vmatpush1.msra.mxu0 0.0
    %199 = vmatprep.subr.mxu0 0.0
    %200 = vmatpush1.msra.mxu0 0.0
    %201 = vmatprep.mubr.f32.mxu0 0.0
    %202 = vmatmul.mubr.f32.gmra.mrb[0].mxu0 %v53
    %v203 = vpop.f32.mrb[0].mxu0
    %v204 = vadd.f32 %v129, %v203
    %v205 = vpop.f32.mrb[0].mxu0
    %206 = vmatprep.mubr.f32.mxu0 0.0
    %207 = vmatmul.mubr.f32.gmra.mrb[0].mxu0 %v56
    %v208 = vpop.f32.mrb[0].mxu0
    %v209 = vadd.f32 %v134, %v208
    %v210 = vpop.f32.mrb[0].mxu0
    %211 = vdwg.mxu0
    %vm212 = vcmask 523264
    %213 = vst.msk [vmem:[#allocation2] sm:$0xff] %vm212, %v204
    %vm214 = vcmask 517120
    %215 = vst.msk [vmem:[#allocation2 + $0x8] sm:$0x3] %vm214, %v209
    // Predicated region
    $region10: #{tpu_custom_call.1} parent=1 // pred_check
      _
    $region11: #{tpu_custom_call.1} parent=1 // pred_check_branch
      %217 = sbr.rel (0) target = $region13
    $region12: #{tpu_custom_call.1} parent=1 // pred_region
      %s219 = ssub.s32 256, 256
      %220 = vsyncadd [#allocation3], %s219
      %s221 = sshll.u32 [#allocation2], 4
      %s222 = int_to_ptr.vmem [resolvable:$true] %s221
      %227 = dma.vmem_to_hbm [thread:$0]  %s222, 256, %s2, [#allocation3], 128, 128, 8
    $region13: #{tpu_custom_call.1} parent=1 // pred_fallthru
      _
    // Predicated region
    $region14: #{tpu_custom_call.1} parent=1 // pred_check
      _
    $region15: #{tpu_custom_call.1} parent=1 // pred_check_branch
      %229 = sbr.rel (0) target = $region17
    $region16: #{tpu_custom_call.1} parent=1 // pred_region
      %230 = dma.done [#allocation3], 256
    $region17: #{tpu_custom_call.1} parent=1 // pred_fallthru
      _
    %231 = vsyncpa [#allocation3], 1

</llo_original>
